<compile_context>
chip_gen: v7x
topology: tpu7x:2x2x1
jax: 0.10.0
libtpu: 0.0.40
codegen_flags: <defaults>
</compile_context>

<pallas_src>
import jax
import jax.numpy as jnp
from jax import lax
from jax.experimental import pallas as pl
from jax.experimental.pallas import tpu as pltpu

BN_EPS = 1e-5
LANE = 128
SUBLANE = 8
MAX_TILE_M = 512


# --------------------------------------------------------------------------
# small helpers
# --------------------------------------------------------------------------
def _round_up(n, m):
    return ((n + m - 1) // m) * m


def _cdiv(a, b):
    return -(-a // b)


def _pick_tile_m(n_rows):
    """Balanced, sublane-aligned row tiles of at most MAX_TILE_M rows."""
    if n_rows <= MAX_TILE_M:
        return max(SUBLANE, _round_up(n_rows, SUBLANE))
    n_tiles = _cdiv(n_rows, MAX_TILE_M)
    return _round_up(_cdiv(n_rows, n_tiles), SUBLANE)


def _pad2(a, rows, cols, value=0.0):
    """Pad a 2-D array; no-op (no XLA pad emitted) when already aligned."""
    pr, pc = rows - a.shape[0], cols - a.shape[1]
    if pr == 0 and pc == 0:
        return a
    return jnp.pad(a, ((0, pr), (0, pc)), constant_values=value)


def _clamp_vmem(nbytes):
    """Working-set estimate -> vmem_limit_bytes with headroom, clamped."""
    return int(min(128 * 1024 * 1024, max(32 * 1024 * 1024, int(nbytes * 1.5))))


def _const_spec(block_shape, single_buffer):
    """BlockSpec for a grid-invariant block (index_map -> all zeros).

    Requests single buffering (pl.Buffered(1)) so resident weights are not
    double-buffered; falls back to the default if the API is unavailable.
    """
    index_map = lambda i: tuple(0 for _ in block_shape)
    if single_buffer:
        try:
            return pl.BlockSpec(block_shape, index_map,
                                pipeline_mode=pl.Buffered(1))
        except Exception:
            pass
    return pl.BlockSpec(block_shape, index_map)


# --------------------------------------------------------------------------
# kernels
# --------------------------------------------------------------------------
def _fused_kernel_factory(tile_m, n_rows, need_mask):
    """Single-tile fully fused kernel: layer1 -> tanh -> BN -> layer2 -> tanh -> layer3."""
    f32 = jnp.float32
    inv_n = 1.0 / float(n_rows)

    def fused_kernel(x_ref, w1_ref, b1_ref, gamma_ref, beta_ref,
                     w2_ref, b2_ref, w3_ref, b3_ref, o_ref):
        h = jnp.dot(x_ref[...], w1_ref[...], preferred_element_type=f32)
        h = jnp.tanh(h + b1_ref[...].astype(f32))

        # Batch statistics over the real rows only; the row mask rides along
        # in the ones vector so the axis-0 reduction is a single MXU matmul.
        if need_mask:
            row = lax.broadcasted_iota(jnp.int32, (1, tile_m), 1)
            ones = (row < n_rows).astype(f32)
        else:
            ones = jnp.ones((1, tile_m), f32)
        s = jnp.dot(ones, h, preferred_element_type=f32)
        sq = jnp.dot(ones, h * h, preferred_element_type=f32)
        mean = s * inv_n
        var = jnp.maximum(sq * inv_n - mean * mean, 0.0)  # biased, train-mode
        inv_std = lax.rsqrt(var + BN_EPS)
        # Padded hidden lanes have h == 0 and zero w2 rows, so the large
        # inv_std there (var == 0 -> ~1/sqrt(eps)) is harmless.
        scale = gamma_ref[...].astype(f32) * inv_std
        shift = beta_ref[...].astype(f32) - mean * scale
        h = h * scale + shift

        h = jnp.dot(h.astype(w2_ref.dtype), w2_ref[...],
                    preferred_element_type=f32)
        h = jnp.tanh(h + b2_ref[...].astype(f32))
        out = jnp.dot(h.astype(w3_ref.dtype), w3_ref[...],
                      preferred_element_type=f32)
        o_ref[...] = (out + b3_ref[...].astype(f32)).astype(o_ref.dtype)

    return fused_kernel


def _stats_kernel_factory(tile_m, n_rows, need_mask):
    """Pass 1: layer1 + tanh, emit per-tile masked [sum, sum_sq] partials."""
    f32 = jnp.float32

    def stats_kernel(x_ref, w1_ref, b1_ref, sum_ref, sq_ref):
        h = jnp.dot(x_ref[...], w1_ref[...], preferred_element_type=f32)
        h = jnp.tanh(h + b1_ref[...].astype(f32))
        if need_mask:
            row = (pl.program_id(0) * tile_m
                   + lax.broadcasted_iota(jnp.int32, (1, tile_m), 1))
            ones = (row < n_rows).astype(f32)
        else:
            ones = jnp.ones((1, tile_m), f32)
        # Axis-0 reductions as MXU matmuls (keeps the XLU free); direct
        # lane-dense stores, no concatenate / relayout.
        sum_ref[...] = jnp.dot(ones, h, preferred_element_type=f32)
        sq_ref[...] = jnp.dot(ones, h * h, preferred_element_type=f32)

    return stats_kernel


def _fwd_kernel(x_ref, w1_ref, b1_ref, scale_ref, shift_ref,
                w2_ref, b2_ref, w3_ref, b3_ref, o_ref):
    """Pass 2: full forward per row tile with BN folded into scale/shift."""
    f32 = jnp.float32
    h = jnp.dot(x_ref[...], w1_ref[...], preferred_element_type=f32)
    h = jnp.tanh(h + b1_ref[...].astype(f32))
    h = h * scale_ref[...] + shift_ref[...]
    h = jnp.dot(h.astype(w2_ref.dtype), w2_ref[...], preferred_element_type=f32)
    h = jnp.tanh(h + b2_ref[...].astype(f32))
    out = jnp.dot(h.astype(w3_ref.dtype), w3_ref[...], preferred_element_type=f32)
    o_ref[...] = (out + b3_ref[...].astype(f32)).astype(o_ref.dtype)


# --------------------------------------------------------------------------
# two-pass tiled driver (large batches)
# --------------------------------------------------------------------------
def _ffn_two_pass(xp, params_p, *, n_rows, tile_m, dims, out_dtype, single_buffer):
    w1p, b1p, gammap, betap, w2p, b2p, w3p, b3p = params_p
    d_in_p, d_h_p, d_out_p = dims
    n_rows_p = xp.shape[0]
    n_tiles = n_rows_p // tile_m
    need_mask = n_rows_p != n_rows
    f32 = jnp.float32
    wb = 1 if single_buffer else 2  # weight buffer count for the VMEM budget

    row_spec = pl.BlockSpec((tile_m, d_in_p), lambda i: (i, 0))
    w1_spec = _const_spec((d_in_p, d_h_p), single_buffer)
    vec_h_spec = _const_spec((1, d_h_p), single_buffer)

    # ---------------- pass 1: per-tile partial BN statistics ---------------
    stats_vmem = 4 * (wb * (d_in_p * d_h_p + d_h_p)
                      + 2 * tile_m * d_in_p          # double-buffered x tiles
                      + 4 * d_h_p                    # partial-stat out tiles
                      + 3 * tile_m * d_h_p)          # f32 intermediates
    part_sum, part_sq = pl.pallas_call(
        _stats_kernel_factory(tile_m, n_rows, need_mask),
        out_shape=(jax.ShapeDtypeStruct((n_tiles, d_h_p), f32),
                   jax.ShapeDtypeStruct((n_tiles, d_h_p), f32)),
        grid=(n_tiles,),
        in_specs=[row_spec, w1_spec, vec_h_spec],
        out_specs=(pl.BlockSpec((1, d_h_p), lambda i: (i, 0)),
                   pl.BlockSpec((1, d_h_p), lambda i: (i, 0))),
        compiler_params=pltpu.CompilerParams(
            dimension_semantics=("parallel",),
            vmem_limit_bytes=_clamp_vmem(stats_vmem)),
    )(xp, w1p, b1p)

    # tiny cross-tile reduce + fold BN into per-feature scale/shift (exact)
    mean = jnp.sum(part_sum, axis=0, keepdims=True) / n_rows
    var = jnp.maximum(jnp.sum(part_sq, axis=0, keepdims=True) / n_rows
                      - mean * mean, 0.0)             # biased, train-mode
    inv_std = lax.rsqrt(var + BN_EPS)
    # Padded hidden lanes: var == 0 -> inv_std ~ 1/sqrt(eps); harmless since
    # h is exactly 0 there and the padded w2 rows are 0.
    scale = gammap.astype(f32) * inv_std
    shift = betap.astype(f32) - mean * scale

    # ---------------- pass 2: full forward with folded BN ------------------
    fwd_vmem = 4 * (wb * (d_in_p * d_h_p + d_h_p * d_h_p + d_h_p * d_out_p
                          + 4 * d_h_p + d_out_p)
                    + 2 * tile_m * (d_in_p + d_out_p)  # double-buffered tiles
                    + 3 * tile_m * d_h_p)              # f32 intermediates
    out_p = pl.pallas_call(
        _fwd_kernel,
        out_shape=jax.ShapeDtypeStruct((n_rows_p, d_out_p), out_dtype),
        grid=(n_tiles,),
        in_specs=[
            row_spec,
            w1_spec,
            vec_h_spec,                                    # b1
            vec_h_spec,                                    # scale
            vec_h_spec,                                    # shift
            _const_spec((d_h_p, d_h_p), single_buffer),    # w2
            vec_h_spec,                                    # b2
            _const_spec((d_h_p, d_out_p), single_buffer),  # w3
            _const_spec((1, d_out_p), single_buffer),      # b3
        ],
        out_specs=pl.BlockSpec((tile_m, d_out_p), lambda i: (i, 0)),
        compiler_params=pltpu.CompilerParams(
            dimension_semantics=("parallel",),
            vmem_limit_bytes=_clamp_vmem(fwd_vmem)),
    )(xp, w1p, b1p, scale, shift, w2p, b2p, w3p, b3p)
    return out_p


# --------------------------------------------------------------------------
# public entry point
# --------------------------------------------------------------------------
def feed_forward_network(x, params, *, use_bf16_matmul=False):
    """x: (B, S, D_in) or (N, D_in). Returns same leading shape with D_out last.

    use_bf16_matmul: cast matmul operands to bf16 (f32 accumulation) for
    v6e/v7x MXU rate; off by default to keep f32-reference accuracy.
    """
    w1, b1, gamma, beta, w2, b2, w3, b3 = params
    orig_shape = x.shape
    x2d = x.reshape(-1, orig_shape[-1]) if x.ndim > 2 else x
    n_rows, d_in = x2d.shape
    d_hidden = w1.shape[1]
    d_out = w3.shape[1]

    # ---- pad features to 128-lane multiples, rows to a tile multiple ------
    d_in_p = _round_up(d_in, LANE)
    d_h_p = _round_up(d_hidden, LANE)
    d_out_p = _round_up(d_out, LANE)
    tile_m = _pick_tile_m(n_rows)
    n_rows_p = _round_up(n_rows, tile_m)
    n_tiles = n_rows_p // tile_m
    need_mask = n_rows_p != n_rows

    mm_dtype = jnp.bfloat16 if use_bf16_matmul else x2d.dtype
    xp = _pad2(x2d, n_rows_p, d_in_p).astype(mm_dtype)
    w1p = _pad2(w1, d_in_p, d_h_p).astype(mm_dtype)
    w2p = _pad2(w2, d_h_p, d_h_p).astype(mm_dtype)
    w3p = _pad2(w3, d_h_p, d_out_p).astype(mm_dtype)
    b1p = _pad2(b1, 1, d_h_p)
    b2p = _pad2(b2, 1, d_h_p)
    b3p = _pad2(b3, 1, d_out_p)
    gammap = _pad2(gamma, 1, d_h_p, value=1.0)
    betap = _pad2(beta, 1, d_h_p)

    if n_tiles == 1:
        # Fused single-kernel path: one launch, x read once, BN in-kernel.
        fused_vmem = 4 * (n_rows_p * (d_in_p + d_out_p + 3 * d_h_p)
                          + d_in_p * d_h_p + d_h_p * d_h_p + d_h_p * d_out_p
                          + 6 * d_h_p + 2 * d_out_p)
        out_p = pl.pallas_call(
            _fused_kernel_factory(n_rows_p, n_rows, need_mask),
            out_shape=jax.ShapeDtypeStruct((n_rows_p, d_out_p), x.dtype),
            compiler_params=pltpu.CompilerParams(
                vmem_limit_bytes=_clamp_vmem(fused_vmem)),
        )(xp, w1p, b1p, gammap, betap, w2p, b2p, w3p, b3p)
    else:
        params_p = (w1p, b1p, gammap, betap, w2p, b2p, w3p, b3p)

        def run(single_buffer):
            return _ffn_two_pass(
                xp, params_p, n_rows=n_rows, tile_m=tile_m,
                dims=(d_in_p, d_h_p, d_out_p),
                out_dtype=x.dtype, single_buffer=single_buffer)

        try:
            out_p = run(True)       # single-buffered resident weights
        except Exception:
            out_p = run(False)      # fallback: default double buffering

    # slice off padding (skipped when statically aligned)
    if n_rows_p != n_rows or d_out_p != d_out:
        out = out_p[:n_rows, :d_out]
    else:
        out = out_p
    if x.ndim > 2:
        out = out.reshape(*orig_shape[:-1], d_out)
    return out


# --------------------------------------------------------------------------
# params + pure-JAX reference
# --------------------------------------------------------------------------
def init_params(key, input_dim, hidden_dim, output_dim, dtype=jnp.float32):
    """Deterministic PyTorch-style init: U(-1/sqrt(fan_in), 1/sqrt(fan_in))."""
    ks = jax.random.split(key, 6)

    def lin(kw, kb, fan_in, fan_out):
        bound = 1.0 / jnp.sqrt(fan_in)
        w = jax.random.uniform(kw, (fan_in, fan_out), dtype, -bound, bound)
        b = jax.random.uniform(kb, (1, fan_out), dtype, -bound, bound)
        return w, b

    w1, b1 = lin(ks[0], ks[1], input_dim, hidden_dim)
    w2, b2 = lin(ks[2], ks[3], hidden_dim, hidden_dim)
    w3, b3 = lin(ks[4], ks[5], hidden_dim, output_dim)
    gamma = jnp.ones((1, hidden_dim), dtype)   # BatchNorm1d weight
    beta = jnp.zeros((1, hidden_dim), dtype)   # BatchNorm1d bias
    return (w1, b1, gamma, beta, w2, b2, w3, b3)


def ffn_ref(x, params):
    """Pure-JAX reference of the PyTorch forward (training-mode batch norm)."""
    w1, b1, gamma, beta, w2, b2, w3, b3 = params
    orig_shape = x.shape
    h = jnp.tanh(x @ w1 + b1)
    if h.ndim > 2:
        h = h.reshape(-1, h.shape[-1])
    mean = h.mean(0, keepdims=True)
    var = ((h - mean) ** 2).mean(0, keepdims=True)
    h = (h - mean) / jnp.sqrt(var + BN_EPS) * gamma + beta
    if x.ndim > 2:
        h = h.reshape(*orig_shape[:-1], h.shape[-1])
    h = jnp.tanh(h @ w2 + b2)
    return h @ w3 + b3


if __name__ == "__main__":
    # Shapes consistent with the module: (batch, seq, input_dim)
    B, S = 2, 8
    INPUT_DIM, HIDDEN_DIM, OUTPUT_DIM = 32, 64, 16

    key = jax.random.PRNGKey(0)
    kx, kp, kx2 = jax.random.split(key, 3)
    x = jax.random.normal(kx, (B, S, INPUT_DIM), jnp.float32)
    params = init_params(kp, INPUT_DIM, HIDDEN_DIM, OUTPUT_DIM)

    # Small batch (16 rows) -> fused single-kernel path.
    out = jax.block_until_ready(feed_forward_network(x, params))
    ref = ffn_ref(x, params)
    assert out.shape == (B, S, OUTPUT_DIM), out.shape
    assert jnp.allclose(out, ref, atol=1e-4, rtol=1e-4), "fused path mismatch"

    # Larger 2-D batch (600 rows) -> two-pass tiled path
    # (2 balanced 304-row tiles, masked row padding, resident weights).
    x_big = jax.random.normal(kx2, (600, INPUT_DIM), jnp.float32)
    out_big = jax.block_until_ready(feed_forward_network(x_big, params))
    ref_big = ffn_ref(x_big, params)
    assert out_big.shape == (600, OUTPUT_DIM), out_big.shape
    assert jnp.allclose(out_big, ref_big, atol=5e-4, rtol=5e-4), "tiled path mismatch"

    print("KERNEL_OK")
</pallas_src>

<mosaic_0001>
module attributes {stable_mosaic.version = 11 : i64} {
  func.func @fused_kernel(%arg0: memref<16x128xf32, #tpu.memory_space<vmem>>, %arg1: memref<128x128xf32, #tpu.memory_space<vmem>>, %arg2: memref<1x128xf32, #tpu.memory_space<vmem>>, %arg3: memref<1x128xf32, #tpu.memory_space<vmem>>, %arg4: memref<1x128xf32, #tpu.memory_space<vmem>>, %arg5: memref<128x128xf32, #tpu.memory_space<vmem>>, %arg6: memref<1x128xf32, #tpu.memory_space<vmem>>, %arg7: memref<128x128xf32, #tpu.memory_space<vmem>>, %arg8: memref<1x128xf32, #tpu.memory_space<vmem>>, %arg9: memref<16x128xf32, #tpu.memory_space<vmem>>) attributes {dimension_semantics = [], scalar_prefetch = 0 : i64, scratch_operands = 0 : i64, tpu.core_type = #tpu.core_type<tc>} {
    %c0 = arith.constant 0 : index
    %c0_0 = arith.constant 0 : index
    %0 = vector.load %arg0[%c0, %c0_0] : memref<16x128xf32, #tpu.memory_space<vmem>>, vector<16x128xf32>
    %c0_1 = arith.constant 0 : index
    %c0_2 = arith.constant 0 : index
    %1 = vector.load %arg1[%c0_1, %c0_2] : memref<128x128xf32, #tpu.memory_space<vmem>>, vector<128x128xf32>
    %cst = arith.constant dense<0.000000e+00> : vector<16x128xf32>
    %2 = tpu.matmul %0, %1, %cst {dimension_numbers = #tpu.dot_dimension_numbers<[1], [0], [0], [1], [0, 0, 1, 1], [], []>} : vector<16x128xf32>, vector<128x128xf32>, vector<16x128xf32> -> vector<16x128xf32>
    %c0_3 = arith.constant 0 : index
    %c0_4 = arith.constant 0 : index
    %3 = vector.load %arg2[%c0_3, %c0_4] : memref<1x128xf32, #tpu.memory_space<vmem>>, vector<1x128xf32>
    %4 = vector.broadcast %3 : vector<1x128xf32> to vector<16x128xf32>
    %5 = arith.addf %2, %4 : vector<16x128xf32>
    %6 = math.tanh %5 : vector<16x128xf32>
    %cst_5 = arith.constant 1.000000e+00 : f32
    %7 = vector.broadcast %cst_5 : f32 to vector<1x16xf32>
    %cst_6 = arith.constant dense<0.000000e+00> : vector<1x128xf32>
    %8 = tpu.matmul %7, %6, %cst_6 {dimension_numbers = #tpu.dot_dimension_numbers<[1], [0], [0], [1], [0, 0, 1, 1], [], []>} : vector<1x16xf32>, vector<16x128xf32>, vector<1x128xf32> -> vector<1x128xf32>
    %9 = arith.mulf %6, %6 : vector<16x128xf32>
    %cst_7 = arith.constant dense<0.000000e+00> : vector<1x128xf32>
    %10 = tpu.matmul %7, %9, %cst_7 {dimension_numbers = #tpu.dot_dimension_numbers<[1], [0], [0], [1], [0, 0, 1, 1], [], []>} : vector<1x16xf32>, vector<16x128xf32>, vector<1x128xf32> -> vector<1x128xf32>
    %cst_8 = arith.constant 6.250000e-02 : f32
    %11 = vector.broadcast %cst_8 : f32 to vector<1x128xf32>
    %12 = arith.mulf %8, %11 : vector<1x128xf32>
    %cst_9 = arith.constant 6.250000e-02 : f32
    %13 = vector.broadcast %cst_9 : f32 to vector<1x128xf32>
    %14 = arith.mulf %10, %13 : vector<1x128xf32>
    %15 = arith.mulf %12, %12 : vector<1x128xf32>
    %16 = arith.subf %14, %15 : vector<1x128xf32>
    %cst_10 = arith.constant 0.000000e+00 : f32
    %17 = vector.broadcast %cst_10 : f32 to vector<1x128xf32>
    %18 = arith.maximumf %16, %17 : vector<1x128xf32>
    %cst_11 = arith.constant 9.99999974E-6 : f32
    %19 = vector.broadcast %cst_11 : f32 to vector<1x128xf32>
    %20 = arith.addf %18, %19 : vector<1x128xf32>
    %21 = math.rsqrt %20 : vector<1x128xf32>
    %c0_12 = arith.constant 0 : index
    %c0_13 = arith.constant 0 : index
    %22 = vector.load %arg3[%c0_12, %c0_13] : memref<1x128xf32, #tpu.memory_space<vmem>>, vector<1x128xf32>
    %23 = arith.mulf %22, %21 : vector<1x128xf32>
    %c0_14 = arith.constant 0 : index
    %c0_15 = arith.constant 0 : index
    %24 = vector.load %arg4[%c0_14, %c0_15] : memref<1x128xf32, #tpu.memory_space<vmem>>, vector<1x128xf32>
    %25 = arith.mulf %12, %23 : vector<1x128xf32>
    %26 = arith.subf %24, %25 : vector<1x128xf32>
    %27 = vector.broadcast %23 : vector<1x128xf32> to vector<16x128xf32>
    %28 = arith.mulf %6, %27 : vector<16x128xf32>
    %29 = vector.broadcast %26 : vector<1x128xf32> to vector<16x128xf32>
    %30 = arith.addf %28, %29 : vector<16x128xf32>
    %c0_16 = arith.constant 0 : index
    %c0_17 = arith.constant 0 : index
    %31 = vector.load %arg5[%c0_16, %c0_17] : memref<128x128xf32, #tpu.memory_space<vmem>>, vector<128x128xf32>
    %cst_18 = arith.constant dense<0.000000e+00> : vector<16x128xf32>
    %32 = tpu.matmul %30, %31, %cst_18 {dimension_numbers = #tpu.dot_dimension_numbers<[1], [0], [0], [1], [0, 0, 1, 1], [], []>} : vector<16x128xf32>, vector<128x128xf32>, vector<16x128xf32> -> vector<16x128xf32>
    %c0_19 = arith.constant 0 : index
    %c0_20 = arith.constant 0 : index
    %33 = vector.load %arg6[%c0_19, %c0_20] : memref<1x128xf32, #tpu.memory_space<vmem>>, vector<1x128xf32>
    %34 = vector.broadcast %33 : vector<1x128xf32> to vector<16x128xf32>
    %35 = arith.addf %32, %34 : vector<16x128xf32>
    %36 = math.tanh %35 : vector<16x128xf32>
    %c0_21 = arith.constant 0 : index
    %c0_22 = arith.constant 0 : index
    %37 = vector.load %arg7[%c0_21, %c0_22] : memref<128x128xf32, #tpu.memory_space<vmem>>, vector<128x128xf32>
    %cst_23 = arith.constant dense<0.000000e+00> : vector<16x128xf32>
    %38 = tpu.matmul %36, %37, %cst_23 {dimension_numbers = #tpu.dot_dimension_numbers<[1], [0], [0], [1], [0, 0, 1, 1], [], []>} : vector<16x128xf32>, vector<128x128xf32>, vector<16x128xf32> -> vector<16x128xf32>
    %c0_24 = arith.constant 0 : index
    %c0_25 = arith.constant 0 : index
    %39 = vector.load %arg8[%c0_24, %c0_25] : memref<1x128xf32, #tpu.memory_space<vmem>>, vector<1x128xf32>
    %40 = vector.broadcast %39 : vector<1x128xf32> to vector<16x128xf32>
    %41 = arith.addf %38, %40 : vector<16x128xf32>
    %c0_26 = arith.constant 0 : index
    %c0_27 = arith.constant 0 : index
    %42 = vector.load %arg9[%c0_26, %c0_27] : memref<16x128xf32, #tpu.memory_space<vmem>>, vector<16x128xf32>
    tpu.vector_store %arg9[%c0_26, %c0_27], %41 {strides = array<i32>} : memref<16x128xf32, #tpu.memory_space<vmem>>, vector<16x128xf32>,
    return
  }
}

</mosaic_0001>

<llo_original>
// kernel: tpu_custom_call.1
$region0: #{tpu_custom_call.1}
  #allocation0 [shape = 'u32[]', space=smem, size = 0x4, offset = 0x4, fixed_abs, tag = 'smem constant byte address 0x4 - core index']
  #allocation1 [shape = 'u32[144,128]{1,0:T(1,128)}', space=vmem, size = 0x12000, scoped, tag = 'internal scratch']
  %s0 = inlined_call_operand.hbm [shape: f32[16,128], index: 0, kind: input, shape index: {}]
  %s1 = inlined_call_operand.hbm [shape: f32[128,128], index: 1, kind: input, shape index: {}]
  %s2 = inlined_call_operand.vmem [shape: f32[1,128], index: 2, kind: input, shape index: {}]
  %s3 = inlined_call_operand.vmem [shape: f32[1,128], index: 3, kind: input, shape index: {}]
  %s4 = inlined_call_operand.vmem [shape: f32[1,128], index: 4, kind: input, shape index: {}]
  %s5 = inlined_call_operand.hbm [shape: f32[128,128], index: 5, kind: input, shape index: {}]
  %s6 = inlined_call_operand.vmem [shape: f32[1,128], index: 6, kind: input, shape index: {}]
  %s7 = inlined_call_operand.hbm [shape: f32[128,128], index: 7, kind: input, shape index: {}]
  %s8 = inlined_call_operand.vmem [shape: f32[1,128], index: 8, kind: input, shape index: {}]
  %s9 = inlined_call_operand.hbm [shape: f32[16,128], index: 9, kind: output, shape index: {}]
  %s10 = sld [smem:[#allocation0]]
  $region62: #{tpu_custom_call.1} parent=0
    _
  %s12 = ssub.s32 1, %s10
  %s13 = scalar_select 0, %s12, %s10
  $region1: #{tpu_custom_call.1} parent=0
    #allocation2 [shape = 'u8[8192]{0}', space=vmem, size = 0x2000, scoped, tag = 'input window, operand 0, single buffered']
    #allocation3 [shape = 's32[1]{0}', space=sflag, size = 0x4, scoped, tag = 'scoped memory for tpu_custom_call.1']
    #allocation4 [shape = 's32[1]{0}', space=sflag, size = 0x4, scoped, tag = 'scoped memory for tpu_custom_call.1']
    #allocation5 [shape = 'u8[65536]{0}', space=vmem, size = 0x10000, scoped, tag = 'input window, operand 1, single buffered']
    #allocation6 [shape = 's32[1]{0}', space=sflag, size = 0x4, scoped, tag = 'scoped memory for tpu_custom_call.1']
    #allocation7 [shape = 'u8[65536]{0}', space=vmem, size = 0x10000, scoped, tag = 'input window, operand 5, single buffered']
    #allocation8 [shape = 'u8[65536]{0}', space=vmem, size = 0x10000, scoped, tag = 'input window, operand 7, single buffered']
    #allocation9 [shape = 's32[1]{0}', space=sflag, size = 0x4, scoped, tag = 'scoped memory for tpu_custom_call.1']
    #allocation10 [shape = 'u8[8192]{0}', space=vmem, size = 0x2000, scoped, tag = 'output window, operand 0, single buffered']
    %14 = vsyncpa [#allocation3], 0
    %15 = vsyncpa [#allocation6], 0
    %16 = vsyncpa [#allocation9], 0
    %17 = vsyncpa [#allocation4], 0
    // Predicated region
    $region2: #{tpu_custom_call.1} parent=1 // pred_check
      _
    $region3: #{tpu_custom_call.1} parent=1 // pred_check_branch
      %19 = sbr.rel (0) target = $region5
    $region4: #{tpu_custom_call.1} parent=1 // pred_region
      %s21 = ssub.s32 256, 256
      %22 = vsyncadd [#allocation3], %s21
      %s23 = sshll.u32 [#allocation2], 4
      %s24 = int_to_ptr.vmem [resolvable:$true] %s23
      %29 = dma.hbm_to_vmem [thread:$0]  %s0, 256, %s24, [#allocation3], 128, 128, 8
    $region5: #{tpu_custom_call.1} parent=1 // pred_fallthru
      _
    // Predicated region
    $region6: #{tpu_custom_call.1} parent=1 // pred_check
      _
    $region7: #{tpu_custom_call.1} parent=1 // pred_check_branch
      %31 = sbr.rel (0) target = $region9
    $region8: #{tpu_custom_call.1} parent=1 // pred_region
      %s33 = ssub.s32 2048, 2048
      %34 = vsyncadd [#allocation6], %s33
      %s35 = sshll.u32 [#allocation5], 4
      %s36 = int_to_ptr.vmem [resolvable:$true] %s35
      %41 = dma.hbm_to_vmem [thread:$0]  %s1, 2048, %s36, [#allocation6], 128, 128, 8
    $region9: #{tpu_custom_call.1} parent=1 // pred_fallthru
      _
    // Predicated region
    $region10: #{tpu_custom_call.1} parent=1 // pred_check
      _
    $region11: #{tpu_custom_call.1} parent=1 // pred_check_branch
      %43 = sbr.rel (0) target = $region13
    $region12: #{tpu_custom_call.1} parent=1 // pred_region
      _
    $region13: #{tpu_custom_call.1} parent=1 // pred_fallthru
      _
    // Predicated region
    $region14: #{tpu_custom_call.1} parent=1 // pred_check
      _
    $region15: #{tpu_custom_call.1} parent=1 // pred_check_branch
      %45 = sbr.rel (0) target = $region17
    $region16: #{tpu_custom_call.1} parent=1 // pred_region
      _
    $region17: #{tpu_custom_call.1} parent=1 // pred_fallthru
      _
    // Predicated region
    $region18: #{tpu_custom_call.1} parent=1 // pred_check
      _
    $region19: #{tpu_custom_call.1} parent=1 // pred_check_branch
      %47 = sbr.rel (0) target = $region21
    $region20: #{tpu_custom_call.1} parent=1 // pred_region
      _
    $region21: #{tpu_custom_call.1} parent=1 // pred_fallthru
      _
    // Predicated region
    $region22: #{tpu_custom_call.1} parent=1 // pred_check
      _
    $region23: #{tpu_custom_call.1} parent=1 // pred_check_branch
      %49 = sbr.rel (0) target = $region25
    $region24: #{tpu_custom_call.1} parent=1 // pred_region
      %s51 = ssub.s32 2048, 2048
      %52 = vsyncadd [#allocation6], %s51
      %s53 = sshll.u32 [#allocation7], 4
      %s54 = int_to_ptr.vmem [resolvable:$true] %s53
      %59 = dma.hbm_to_vmem [thread:$0]  %s5, 2048, %s54, [#allocation6], 128, 128, 8
    $region25: #{tpu_custom_call.1} parent=1 // pred_fallthru
      _
    // Predicated region
    $region26: #{tpu_custom_call.1} parent=1 // pred_check
      _
    $region27: #{tpu_custom_call.1} parent=1 // pred_check_branch
      %61 = sbr.rel (0) target = $region29
    $region28: #{tpu_custom_call.1} parent=1 // pred_region
      _
    $region29: #{tpu_custom_call.1} parent=1 // pred_fallthru
      _
    // Predicated region
    $region30: #{tpu_custom_call.1} parent=1 // pred_check
      _
    $region31: #{tpu_custom_call.1} parent=1 // pred_check_branch
      %63 = sbr.rel (0) target = $region33
    $region32: #{tpu_custom_call.1} parent=1 // pred_region
      %s65 = ssub.s32 2048, 2048
      %66 = vsyncadd [#allocation9], %s65
      %s67 = sshll.u32 [#allocation8], 4
      %s68 = int_to_ptr.vmem [resolvable:$true] %s67
      %73 = dma.hbm_to_vmem [thread:$0]  %s7, 2048, %s68, [#allocation9], 128, 128, 8
    $region33: #{tpu_custom_call.1} parent=1 // pred_fallthru
      _
    // Predicated region
    $region34: #{tpu_custom_call.1} parent=1 // pred_check
      _
    $region35: #{tpu_custom_call.1} parent=1 // pred_check_branch
      %75 = sbr.rel (0) target = $region37
    $region36: #{tpu_custom_call.1} parent=1 // pred_region
      _
    $region37: #{tpu_custom_call.1} parent=1 // pred_fallthru
      _
    // Predicated region
    $region38: #{tpu_custom_call.1} parent=1 // pred_check
      _
    $region39: #{tpu_custom_call.1} parent=1 // pred_check_branch
      %77 = sbr.rel (0) target = $region41
    $region40: #{tpu_custom_call.1} parent=1 // pred_region
      %78 = dma.done [#allocation3], 256
    $region41: #{tpu_custom_call.1} parent=1 // pred_fallthru
      _
    // Predicated region
    $region42: #{tpu_custom_call.1} parent=1 // pred_check
      _
    $region43: #{tpu_custom_call.1} parent=1 // pred_check_branch
      %80 = sbr.rel (0) target = $region45
    $region44: #{tpu_custom_call.1} parent=1 // pred_region
      %81 = dma.done [#allocation6], 2048
    $region45: #{tpu_custom_call.1} parent=1 // pred_fallthru
      _
    // Predicated region
    $region46: #{tpu_custom_call.1} parent=1 // pred_check
      _
    $region47: #{tpu_custom_call.1} parent=1 // pred_check_branch
      %83 = sbr.rel (0) target = $region49
    $region48: #{tpu_custom_call.1} parent=1 // pred_region
      %84 = dma.done [#allocation6], 2048
    $region49: #{tpu_custom_call.1} parent=1 // pred_fallthru
      _
    // Predicated region
    $region50: #{tpu_custom_call.1} parent=1 // pred_check
      _
    $region51: #{tpu_custom_call.1} parent=1 // pred_check_branch
      %86 = sbr.rel (0) target = $region53
    $region52: #{tpu_custom_call.1} parent=1 // pred_region
      %87 = dma.done [#allocation9], 2048
    $region53: #{tpu_custom_call.1} parent=1 // pred_fallthru
      _
    %v88 = vld [vmem:[#allocation2] sm:$0xff]
    %v89 = vld [vmem:[#allocation2 + $0x8] sm:$0xff]
    %v90 = vld [vmem:[#allocation5] sm:$0xff]
    %v91 = vld [vmem:[#allocation5 + $0x8] sm:$0xff]
    %v92 = vld [vmem:[#allocation5 + $0x10] sm:$0xff]
    %v93 = vld [vmem:[#allocation5 + $0x18] sm:$0xff]
    %v94 = vld [vmem:[#allocation5 + $0x20] sm:$0xff]
    %v95 = vld [vmem:[#allocation5 + $0x28] sm:$0xff]
    %v96 = vld [vmem:[#allocation5 + $0x30] sm:$0xff]
    %v97 = vld [vmem:[#allocation5 + $0x38] sm:$0xff]
    %v98 = vld [vmem:[#allocation5 + $0x40] sm:$0xff]
    %v99 = vld [vmem:[#allocation5 + $0x48] sm:$0xff]
    %v100 = vld [vmem:[#allocation5 + $0x50] sm:$0xff]
    %v101 = vld [vmem:[#allocation5 + $0x58] sm:$0xff]
    %v102 = vld [vmem:[#allocation5 + $0x60] sm:$0xff]
    %v103 = vld [vmem:[#allocation5 + $0x68] sm:$0xff]
    %v104 = vld [vmem:[#allocation5 + $0x70] sm:$0xff]
    %v105 = vld [vmem:[#allocation5 + $0x78] sm:$0xff]
    %v106 = vld [vmem:[%s2] sm:$0x1]
    %v108 = vlaneseq
    %v109 = vshrl.u32 %v108, 7
    %v110 = vsub.s32 0, %v109
    %v111 = vrot.slane %v106, %v110
    %113 = vmatprep.subr.mxu0 0.0
    %114 = vmatpush1.msra.mxu0 %v90
    %115 = vmatprep.subr.mxu0 0.0
    %116 = vmatpush1.msra.mxu0 %v91
    %117 = vmatprep.subr.mxu0 0.0
    %118 = vmatpush1.msra.mxu0 %v92
    %119 = vmatprep.subr.mxu0 0.0
    %120 = vmatpush1.msra.mxu0 %v93
    %121 = vmatprep.subr.mxu0 0.0
    %122 = vmatpush1.msra.mxu0 %v94
    %123 = vmatprep.subr.mxu0 0.0
    %124 = vmatpush1.msra.mxu0 %v95
    %125 = vmatprep.subr.mxu0 0.0
    %126 = vmatpush1.msra.mxu0 %v96
    %127 = vmatprep.subr.mxu0 0.0
    %128 = vmatpush1.msra.mxu0 %v97
    %129 = vmatprep.subr.mxu0 0.0
    %130 = vmatpush1.msra.mxu0 %v98
    %131 = vmatprep.subr.mxu0 0.0
    %132 = vmatpush1.msra.mxu0 %v99
    %133 = vmatprep.subr.mxu0 0.0
    %134 = vmatpush1.msra.mxu0 %v100
    %135 = vmatprep.subr.mxu0 0.0
    %136 = vmatpush1.msra.mxu0 %v101
    %137 = vmatprep.subr.mxu0 0.0
    %138 = vmatpush1.msra.mxu0 %v102
    %139 = vmatprep.subr.mxu0 0.0
    %140 = vmatpush1.msra.mxu0 %v103
    %141 = vmatprep.subr.mxu0 0.0
    %142 = vmatpush1.msra.mxu0 %v104
    %143 = vmatprep.subr.mxu0 0.0
    %144 = vmatpush1.msra.mxu0 %v105
    %145 = vmatprep.subr.mxu0 0.0
    %146 = vmatpush1.msra.mxu0 0.0
    %147 = vmatprep.subr.mxu0 0.0
    %148 = vmatpush1.msra.mxu0 0.0
    %149 = vmatprep.subr.mxu0 0.0
    %150 = vmatpush1.msra.mxu0 0.0
    %151 = vmatprep.subr.mxu0 0.0
    %152 = vmatpush1.msra.mxu0 0.0
    %153 = vmatprep.subr.mxu0 0.0
    %154 = vmatpush1.msra.mxu0 0.0
    %155 = vmatprep.subr.mxu0 0.0
    %156 = vmatpush1.msra.mxu0 0.0
    %157 = vmatprep.subr.mxu0 0.0
    %158 = vmatpush1.msra.mxu0 0.0
    %159 = vmatprep.subr.mxu0 0.0
    %160 = vmatpush1.msra.mxu0 0.0
    %161 = vmatprep.subr.mxu0 0.0
    %162 = vmatpush1.msra.mxu0 0.0
    %163 = vmatprep.subr.mxu0 0.0
    %164 = vmatpush1.msra.mxu0 0.0
    %165 = vmatprep.subr.mxu0 0.0
    %166 = vmatpush1.msra.mxu0 0.0
    %167 = vmatprep.subr.mxu0 0.0
    %168 = vmatpush1.msra.mxu0 0.0
    %169 = vmatprep.subr.mxu0 0.0
    %170 = vmatpush1.msra.mxu0 0.0
    %171 = vmatprep.subr.mxu0 0.0
    %172 = vmatpush1.msra.mxu0 0.0
    %173 = vmatprep.subr.mxu0 0.0
    %174 = vmatpush1.msra.mxu0 0.0
    %175 = vmatprep.subr.mxu0 0.0
    %176 = vmatpush1.msra.mxu0 0.0
    %177 = vmatprep.mubr.f32.mxu0 0.0
    %178 = vmatmul.mubr.f32.gmra.mrb[0].mxu0 %v88
    %v179 = vpop.f32.mrb[0].mxu0
    %v180 = vadd.f32 %v111, %v179
    %v181 = vpop.f32.mrb[0].mxu0
    %182 = vmatprep.mubr.f32.mxu0 0.0
    %183 = vmatmul.mubr.f32.gmra.mrb[0].mxu0 %v89
    %v184 = vpop.f32.mrb[0].mxu0
    %v185 = vadd.f32 %v111, %v184
    %v186 = vpop.f32.mrb[0].mxu0
    %187 = vdwg.mxu0
    %v188 = vtanh.pop %v180
    %v189 = vtanh.pop %v185
    %vm190 = vcmask 130048
    %v192 = vsel %vm190, 1.0, 0
    %194 = vmatprep.subr.mxu0 0.0
    %195 = vmatpush1.msra.mxu0 %v188
    %196 = vmatprep.subr.mxu0 0.0
    %197 = vmatpush1.msra.mxu0 %v189
    %198 = vmatprep.subr.mxu0 0.0
    %199 = vmatpush1.msra.mxu0 0.0
    %200 = vmatprep.subr.mxu0 0.0
    %201 = vmatpush1.msra.mxu0 0.0
    %202 = vmatprep.subr.mxu0 0.0
    %203 = vmatpush1.msra.mxu0 0.0
    %204 = vmatprep.subr.mxu0 0.0
    %205 = vmatpush1.msra.mxu0 0.0
    %206 = vmatprep.subr.mxu0 0.0
    %207 = vmatpush1.msra.mxu0 0.0
    %208 = vmatprep.subr.mxu0 0.0
    %209 = vmatpush1.msra.mxu0 0.0
    %210 = vmatprep.subr.mxu0 0.0
    %211 = vmatpush1.msra.mxu0 0.0
    %212 = vmatprep.subr.mxu0 0.0
    %213 = vmatpush1.msra.mxu0 0.0
    %214 = vmatprep.subr.mxu0 0.0
    %215 = vmatpush1.msra.mxu0 0.0
    %216 = vmatprep.subr.mxu0 0.0
    %217 = vmatpush1.msra.mxu0 0.0
    %218 = vmatprep.subr.mxu0 0.0
    %219 = vmatpush1.msra.mxu0 0.0
    %220 = vmatprep.subr.mxu0 0.0
    %221 = vmatpush1.msra.mxu0 0.0
    %222 = vmatprep.subr.mxu0 0.0
    %223 = vmatpush1.msra.mxu0 0.0
    %224 = vmatprep.subr.mxu0 0.0
    %225 = vmatpush1.msra.mxu0 0.0
    %226 = vmatprep.subr.mxu0 0.0
    %227 = vmatpush1.msra.mxu0 0.0
    %228 = vmatprep.subr.mxu0 0.0
    %229 = vmatpush1.msra.mxu0 0.0
    %230 = vmatprep.subr.mxu0 0.0
    %231 = vmatpush1.msra.mxu0 0.0
    %232 = vmatprep.subr.mxu0 0.0
    %233 = vmatpush1.msra.mxu0 0.0
    %234 = vmatprep.subr.mxu0 0.0
    %235 = vmatpush1.msra.mxu0 0.0
    %236 = vmatprep.subr.mxu0 0.0
    %237 = vmatpush1.msra.mxu0 0.0
    %238 = vmatprep.subr.mxu0 0.0
    %239 = vmatpush1.msra.mxu0 0.0
    %240 = vmatprep.subr.mxu0 0.0
    %241 = vmatpush1.msra.mxu0 0.0
    %242 = vmatprep.subr.mxu0 0.0
    %243 = vmatpush1.msra.mxu0 0.0
    %244 = vmatprep.subr.mxu0 0.0
    %245 = vmatpush1.msra.mxu0 0.0
    %246 = vmatprep.subr.mxu0 0.0
    %247 = vmatpush1.msra.mxu0 0.0
    %248 = vmatprep.subr.mxu0 0.0
    %249 = vmatpush1.msra.mxu0 0.0
    %250 = vmatprep.subr.mxu0 0.0
    %251 = vmatpush1.msra.mxu0 0.0
    %252 = vmatprep.subr.mxu0 0.0
    %253 = vmatpush1.msra.mxu0 0.0
    %254 = vmatprep.subr.mxu0 0.0
    %255 = vmatpush1.msra.mxu0 0.0
    %256 = vmatprep.subr.mxu0 0.0
    %257 = vmatpush1.msra.mxu0 0.0
    %258 = vmatprep.mubr.f32.mxu0 0.0
    %259 = vmatmul.mubr.f32.gmra.mrb[0].mxu0 %v192
    %v260 = vpop.f32.mrb[0].mxu0
    %v261 = vadd.f32 0.0, %v260
    %v262 = vpop.f32.mrb[0].mxu0
    %263 = vdwg.mxu0
    %v264 = vmul.f32 %v188, %v188
    %v265 = vmul.f32 %v189, %v189
    %266 = vmatprep.subr.mxu0 0.0
    %267 = vmatpush1.msra.mxu0 %v264
    %268 = vmatprep.subr.mxu0 0.0
    %269 = vmatpush1.msra.mxu0 %v265
    %270 = vmatprep.subr.mxu0 0.0
    %271 = vmatpush1.msra.mxu0 0.0
    %272 = vmatprep.subr.mxu0 0.0
    %273 = vmatpush1.msra.mxu0 0.0
    %274 = vmatprep.subr.mxu0 0.0
    %275 = vmatpush1.msra.mxu0 0.0
    %276 = vmatprep.subr.mxu0 0.0
    %277 = vmatpush1.msra.mxu0 0.0
    %278 = vmatprep.subr.mxu0 0.0
    %279 = vmatpush1.msra.mxu0 0.0
    %280 = vmatprep.subr.mxu0 0.0
    %281 = vmatpush1.msra.mxu0 0.0
    %282 = vmatprep.subr.mxu0 0.0
    %283 = vmatpush1.msra.mxu0 0.0
    %284 = vmatprep.subr.mxu0 0.0
    %285 = vmatpush1.msra.mxu0 0.0
    %286 = vmatprep.subr.mxu0 0.0
    %287 = vmatpush1.msra.mxu0 0.0
    %288 = vmatprep.subr.mxu0 0.0
    %289 = vmatpush1.msra.mxu0 0.0
    %290 = vmatprep.subr.mxu0 0.0
    %291 = vmatpush1.msra.mxu0 0.0
    %292 = vmatprep.subr.mxu0 0.0
    %293 = vmatpush1.msra.mxu0 0.0
    %294 = vmatprep.subr.mxu0 0.0
    %295 = vmatpush1.msra.mxu0 0.0
    %296 = vmatprep.subr.mxu0 0.0
    %297 = vmatpush1.msra.mxu0 0.0
    %298 = vmatprep.subr.mxu0 0.0
    %299 = vmatpush1.msra.mxu0 0.0
    %300 = vmatprep.subr.mxu0 0.0
    %301 = vmatpush1.msra.mxu0 0.0
    %302 = vmatprep.subr.mxu0 0.0
    %303 = vmatpush1.msra.mxu0 0.0
    %304 = vmatprep.subr.mxu0 0.0
    %305 = vmatpush1.msra.mxu0 0.0
    %306 = vmatprep.subr.mxu0 0.0
    %307 = vmatpush1.msra.mxu0 0.0
    %308 = vmatprep.subr.mxu0 0.0
    %309 = vmatpush1.msra.mxu0 0.0
    %310 = vmatprep.subr.mxu0 0.0
    %311 = vmatpush1.msra.mxu0 0.0
    %312 = vmatprep.subr.mxu0 0.0
    %313 = vmatpush1.msra.mxu0 0.0
    %314 = vmatprep.subr.mxu0 0.0
    %315 = vmatpush1.msra.mxu0 0.0
    %316 = vmatprep.subr.mxu0 0.0
    %317 = vmatpush1.msra.mxu0 0.0
    %318 = vmatprep.subr.mxu0 0.0
    %319 = vmatpush1.msra.mxu0 0.0
    %320 = vmatprep.subr.mxu0 0.0
    %321 = vmatpush1.msra.mxu0 0.0
    %322 = vmatprep.subr.mxu0 0.0
    %323 = vmatpush1.msra.mxu0 0.0
    %324 = vmatprep.subr.mxu0 0.0
    %325 = vmatpush1.msra.mxu0 0.0
    %326 = vmatprep.subr.mxu0 0.0
    %327 = vmatpush1.msra.mxu0 0.0
    %328 = vmatprep.subr.mxu0 0.0
    %329 = vmatpush1.msra.mxu0 0.0
    %330 = vmatprep.mubr.f32.mxu0 0.0
    %331 = vmatmul.mubr.f32.gmra.mrb[0].mxu0 %v192
    %v332 = vpop.f32.mrb[0].mxu0
    %v333 = vadd.f32 0.0, %v332
    %v334 = vpop.f32.mrb[0].mxu0
    %335 = vdwg.mxu0
    %v336 = vmul.f32 %v261, 0.0625
    %v337 = vmul.f32 %v333, 0.0625
    %v338 = vmul.f32 %v336, %v336
    %v339 = vsub.f32 %v337, %v338
    %v340 = vmax.f32 %v339, 0.0
    %v341 = vadd.f32 %v340, 1e-05
    %v342 = vrsqrt.pop %v341
    %v343 = vld [vmem:[%s3] sm:$0x1]
    %v344 = vmul.f32 %v343, %v342
    %v345 = vld [vmem:[%s4] sm:$0x1]
    %v346 = vmul.f32 %v336, %v344
    %v347 = vsub.f32 %v345, %v346
    %v349 = vlaneseq
    %v350 = vshrl.u32 %v349, 7
    %v351 = vsub.s32 0, %v350
    %v352 = vrot.slane %v344, %v351
    %v354 = vmul.f32 %v188, %v352
    %v355 = vmul.f32 %v189, %v352
    %v357 = vlaneseq
    %v358 = vshrl.u32 %v357, 7
    %v359 = vsub.s32 0, %v358
    %v360 = vrot.slane %v347, %v359
    %v362 = vadd.f32 %v354, %v360
    %v363 = vadd.f32 %v355, %v360
    %v364 = vld [vmem:[#allocation7] sm:$0xff]
    %v365 = vld [vmem:[#allocation7 + $0x8] sm:$0xff]
    %v366 = vld [vmem:[#allocation7 + $0x10] sm:$0xff]
    %v367 = vld [vmem:[#allocation7 + $0x18] sm:$0xff]
    %v368 = vld [vmem:[#allocation7 + $0x20] sm:$0xff]
    %v369 = vld [vmem:[#allocation7 + $0x28] sm:$0xff]
    %v370 = vld [vmem:[#allocation7 + $0x30] sm:$0xff]
    %v371 = vld [vmem:[#allocation7 + $0x38] sm:$0xff]
    %v372 = vld [vmem:[#allocation7 + $0x40] sm:$0xff]
    %v373 = vld [vmem:[#allocation7 + $0x48] sm:$0xff]
    %v374 = vld [vmem:[#allocation7 + $0x50] sm:$0xff]
    %v375 = vld [vmem:[#allocation7 + $0x58] sm:$0xff]
    %v376 = vld [vmem:[#allocation7 + $0x60] sm:$0xff]
    %v377 = vld [vmem:[#allocation7 + $0x68] sm:$0xff]
    %v378 = vld [vmem:[#allocation7 + $0x70] sm:$0xff]
    %v379 = vld [vmem:[#allocation7 + $0x78] sm:$0xff]
    %v380 = vld [vmem:[%s6] sm:$0x1]
    %v382 = vlaneseq
    %v383 = vshrl.u32 %v382, 7
    %v384 = vsub.s32 0, %v383
    %v385 = vrot.slane %v380, %v384
    %387 = vmatprep.subr.mxu0 0.0
    %388 = vmatpush1.msra.mxu0 %v364
    %389 = vmatprep.subr.mxu0 0.0
    %390 = vmatpush1.msra.mxu0 %v365
    %391 = vmatprep.subr.mxu0 0.0
    %392 = vmatpush1.msra.mxu0 %v366
    %393 = vmatprep.subr.mxu0 0.0
    %394 = vmatpush1.msra.mxu0 %v367
    %395 = vmatprep.subr.mxu0 0.0
    %396 = vmatpush1.msra.mxu0 %v368
    %397 = vmatprep.subr.mxu0 0.0
    %398 = vmatpush1.msra.mxu0 %v369
    %399 = vmatprep.subr.mxu0 0.0
    %400 = vmatpush1.msra.mxu0 %v370
    %401 = vmatprep.subr.mxu0 0.0
    %402 = vmatpush1.msra.mxu0 %v371
    %403 = vmatprep.subr.mxu0 0.0
    %404 = vmatpush1.msra.mxu0 %v372
    %405 = vmatprep.subr.mxu0 0.0
    %406 = vmatpush1.msra.mxu0 %v373
    %407 = vmatprep.subr.mxu0 0.0
    %408 = vmatpush1.msra.mxu0 %v374
    %409 = vmatprep.subr.mxu0 0.0
    %410 = vmatpush1.msra.mxu0 %v375
    %411 = vmatprep.subr.mxu0 0.0
    %412 = vmatpush1.msra.mxu0 %v376
    %413 = vmatprep.subr.mxu0 0.0
    %414 = vmatpush1.msra.mxu0 %v377
    %415 = vmatprep.subr.mxu0 0.0
    %416 = vmatpush1.msra.mxu0 %v378
    %417 = vmatprep.subr.mxu0 0.0
    %418 = vmatpush1.msra.mxu0 %v379
    %419 = vmatprep.subr.mxu0 0.0
    %420 = vmatpush1.msra.mxu0 0.0
    %421 = vmatprep.subr.mxu0 0.0
    %422 = vmatpush1.msra.mxu0 0.0
    %423 = vmatprep.subr.mxu0 0.0
    %424 = vmatpush1.msra.mxu0 0.0
    %425 = vmatprep.subr.mxu0 0.0
    %426 = vmatpush1.msra.mxu0 0.0
    %427 = vmatprep.subr.mxu0 0.0
    %428 = vmatpush1.msra.mxu0 0.0
    %429 = vmatprep.subr.mxu0 0.0
    %430 = vmatpush1.msra.mxu0 0.0
    %431 = vmatprep.subr.mxu0 0.0
    %432 = vmatpush1.msra.mxu0 0.0
    %433 = vmatprep.subr.mxu0 0.0
    %434 = vmatpush1.msra.mxu0 0.0
    %435 = vmatprep.subr.mxu0 0.0
    %436 = vmatpush1.msra.mxu0 0.0
    %437 = vmatprep.subr.mxu0 0.0
    %438 = vmatpush1.msra.mxu0 0.0
    %439 = vmatprep.subr.mxu0 0.0
    %440 = vmatpush1.msra.mxu0 0.0
    %441 = vmatprep.subr.mxu0 0.0
    %442 = vmatpush1.msra.mxu0 0.0
    %443 = vmatprep.subr.mxu0 0.0
    %444 = vmatpush1.msra.mxu0 0.0
    %445 = vmatprep.subr.mxu0 0.0
    %446 = vmatpush1.msra.mxu0 0.0
    %447 = vmatprep.subr.mxu0 0.0
    %448 = vmatpush1.msra.mxu0 0.0
    %449 = vmatprep.subr.mxu0 0.0
    %450 = vmatpush1.msra.mxu0 0.0
    %451 = vmatprep.mubr.f32.mxu0 0.0
    %452 = vmatmul.mubr.f32.gmra.mrb[0].mxu0 %v362
    %v453 = vpop.f32.mrb[0].mxu0
    %v454 = vadd.f32 %v385, %v453
    %v455 = vpop.f32.mrb[0].mxu0
    %456 = vmatprep.mubr.f32.mxu0 0.0
    %457 = vmatmul.mubr.f32.gmra.mrb[0].mxu0 %v363
    %v458 = vpop.f32.mrb[0].mxu0
    %v459 = vadd.f32 %v385, %v458
    %v460 = vpop.f32.mrb[0].mxu0
    %461 = vdwg.mxu0
    %v462 = vtanh.pop %v454
    %v463 = vtanh.pop %v459
    %v464 = vld [vmem:[#allocation8] sm:$0xff]
    %v465 = vld [vmem:[#allocation8 + $0x8] sm:$0xff]
    %v466 = vld [vmem:[#allocation8 + $0x10] sm:$0xff]
    %v467 = vld [vmem:[#allocation8 + $0x18] sm:$0xff]
    %v468 = vld [vmem:[#allocation8 + $0x20] sm:$0xff]
    %v469 = vld [vmem:[#allocation8 + $0x28] sm:$0xff]
    %v470 = vld [vmem:[#allocation8 + $0x30] sm:$0xff]
    %v471 = vld [vmem:[#allocation8 + $0x38] sm:$0xff]
    %v472 = vld [vmem:[#allocation8 + $0x40] sm:$0xff]
    %v473 = vld [vmem:[#allocation8 + $0x48] sm:$0xff]
    %v474 = vld [vmem:[#allocation8 + $0x50] sm:$0xff]
    %v475 = vld [vmem:[#allocation8 + $0x58] sm:$0xff]
    %v476 = vld [vmem:[#allocation8 + $0x60] sm:$0xff]
    %v477 = vld [vmem:[#allocation8 + $0x68] sm:$0xff]
    %v478 = vld [vmem:[#allocation8 + $0x70] sm:$0xff]
    %v479 = vld [vmem:[#allocation8 + $0x78] sm:$0xff]
    %v480 = vld [vmem:[%s8] sm:$0x1]
    %v482 = vlaneseq
    %v483 = vshrl.u32 %v482, 7
    %v484 = vsub.s32 0, %v483
    %v485 = vrot.slane %v480, %v484
    %487 = vmatprep.subr.mxu0 0.0
    %488 = vmatpush1.msra.mxu0 %v464
    %489 = vmatprep.subr.mxu0 0.0
    %490 = vmatpush1.msra.mxu0 %v465
    %491 = vmatprep.subr.mxu0 0.0
    %492 = vmatpush1.msra.mxu0 %v466
    %493 = vmatprep.subr.mxu0 0.0
    %494 = vmatpush1.msra.mxu0 %v467
    %495 = vmatprep.subr.mxu0 0.0
    %496 = vmatpush1.msra.mxu0 %v468
    %497 = vmatprep.subr.mxu0 0.0
    %498 = vmatpush1.msra.mxu0 %v469
    %499 = vmatprep.subr.mxu0 0.0
    %500 = vmatpush1.msra.mxu0 %v470
    %501 = vmatprep.subr.mxu0 0.0
    %502 = vmatpush1.msra.mxu0 %v471
    %503 = vmatprep.subr.mxu0 0.0
    %504 = vmatpush1.msra.mxu0 %v472
    %505 = vmatprep.subr.mxu0 0.0
    %506 = vmatpush1.msra.mxu0 %v473
    %507 = vmatprep.subr.mxu0 0.0
    %508 = vmatpush1.msra.mxu0 %v474
    %509 = vmatprep.subr.mxu0 0.0
    %510 = vmatpush1.msra.mxu0 %v475
    %511 = vmatprep.subr.mxu0 0.0
    %512 = vmatpush1.msra.mxu0 %v476
    %513 = vmatprep.subr.mxu0 0.0
    %514 = vmatpush1.msra.mxu0 %v477
    %515 = vmatprep.subr.mxu0 0.0
    %516 = vmatpush1.msra.mxu0 %v478
    %517 = vmatprep.subr.mxu0 0.0
    %518 = vmatpush1.msra.mxu0 %v479
    %519 = vmatprep.subr.mxu0 0.0
    %520 = vmatpush1.msra.mxu0 0.0
    %521 = vmatprep.subr.mxu0 0.0
    %522 = vmatpush1.msra.mxu0 0.0
    %523 = vmatprep.subr.mxu0 0.0
    %524 = vmatpush1.msra.mxu0 0.0
    %525 = vmatprep.subr.mxu0 0.0
    %526 = vmatpush1.msra.mxu0 0.0
    %527 = vmatprep.subr.mxu0 0.0
    %528 = vmatpush1.msra.mxu0 0.0
    %529 = vmatprep.subr.mxu0 0.0
    %530 = vmatpush1.msra.mxu0 0.0
    %531 = vmatprep.subr.mxu0 0.0
    %532 = vmatpush1.msra.mxu0 0.0
    %533 = vmatprep.subr.mxu0 0.0
    %534 = vmatpush1.msra.mxu0 0.0
    %535 = vmatprep.subr.mxu0 0.0
    %536 = vmatpush1.msra.mxu0 0.0
    %537 = vmatprep.subr.mxu0 0.0
    %538 = vmatpush1.msra.mxu0 0.0
    %539 = vmatprep.subr.mxu0 0.0
    %540 = vmatpush1.msra.mxu0 0.0
    %541 = vmatprep.subr.mxu0 0.0
    %542 = vmatpush1.msra.mxu0 0.0
    %543 = vmatprep.subr.mxu0 0.0
    %544 = vmatpush1.msra.mxu0 0.0
    %545 = vmatprep.subr.mxu0 0.0
    %546 = vmatpush1.msra.mxu0 0.0
    %547 = vmatprep.subr.mxu0 0.0
    %548 = vmatpush1.msra.mxu0 0.0
    %549 = vmatprep.subr.mxu0 0.0
    %550 = vmatpush1.msra.mxu0 0.0
    %551 = vmatprep.mubr.f32.mxu0 0.0
    %552 = vmatmul.mubr.f32.gmra.mrb[0].mxu0 %v462
    %v553 = vpop.f32.mrb[0].mxu0
    %v554 = vadd.f32 %v485, %v553
    %v555 = vpop.f32.mrb[0].mxu0
    %556 = vmatprep.mubr.f32.mxu0 0.0
    %557 = vmatmul.mubr.f32.gmra.mrb[0].mxu0 %v463
    %v558 = vpop.f32.mrb[0].mxu0
    %v559 = vadd.f32 %v485, %v558
    %v560 = vpop.f32.mrb[0].mxu0
    %561 = vdwg.mxu0
    %562 = vst [vmem:[#allocation10] sm:$0xff] %v554
    %563 = vst [vmem:[#allocation10 + $0x8] sm:$0xff] %v559
    // Predicated region
    $region54: #{tpu_custom_call.1} parent=1 // pred_check
      _
    $region55: #{tpu_custom_call.1} parent=1 // pred_check_branch
      %565 = sbr.rel (0) target = $region57
    $region56: #{tpu_custom_call.1} parent=1 // pred_region
      %s567 = ssub.s32 256, 256
      %568 = vsyncadd [#allocation4], %s567
      %s569 = sshll.u32 [#allocation10], 4
      %s570 = int_to_ptr.vmem [resolvable:$true] %s569
      %575 = dma.vmem_to_hbm [thread:$0]  %s570, 256, %s9, [#allocation4], 128, 128, 8
    $region57: #{tpu_custom_call.1} parent=1 // pred_fallthru
      _
    // Predicated region
    $region58: #{tpu_custom_call.1} parent=1 // pred_check
      _
    $region59: #{tpu_custom_call.1} parent=1 // pred_check_branch
      %577 = sbr.rel (0) target = $region61
    $region60: #{tpu_custom_call.1} parent=1 // pred_region
      %578 = dma.done [#allocation4], 256
    $region61: #{tpu_custom_call.1} parent=1 // pred_fallthru
      _
    %579 = vsyncpa [#allocation3], 1
    %580 = vsyncpa [#allocation6], 1
    %581 = vsyncpa [#allocation9], 1
    %582 = vsyncpa [#allocation4], 1

</llo_original>
